<compile_context>
chip_gen: v5e
topology: v5e:2x2
jax: 0.10.0
libtpu: 0.0.40
codegen_flags: <defaults>
</compile_context>

<pallas_src>
import jax
import jax.numpy as jnp
from jax.experimental import pallas as pl
from jax.experimental.pallas import tpu as pltpu

HIDDEN = 24
PAD = 128          # lane width for hidden/output features
N_LAYERS = 4


def _round_up(x, m):
    return (x + m - 1) // m * m


def _cdiv(a, b):
    return (a + b - 1) // b


def mlp_kernel(x_ref, w_ref, b_ref, o_ref):
    # x_ref: [TB, in_dim] f32   w_ref: [4, 128, 128] bf16 (zero-padded)
    # b_ref: [4, 1, 128] f32    o_ref: [TB, 128] f32
    in_dim = x_ref.shape[-1]
    x = x_ref[...].astype(jnp.bfloat16)
    # fc1 + relu (only the first `in_dim` weight rows matter; static slice is free)
    h = jnp.dot(x, w_ref[0][:in_dim, :], preferred_element_type=jnp.float32)
    h = jnp.maximum(h + b_ref[0], 0.0)
    # fc2 + relu
    h = jnp.dot(h.astype(jnp.bfloat16), w_ref[1], preferred_element_type=jnp.float32)
    h = jnp.maximum(h + b_ref[1], 0.0)
    # fc3 + relu
    h = jnp.dot(h.astype(jnp.bfloat16), w_ref[2], preferred_element_type=jnp.float32)
    h = jnp.maximum(h + b_ref[2], 0.0)
    # fc4 (no activation)
    h = jnp.dot(h.astype(jnp.bfloat16), w_ref[3], preferred_element_type=jnp.float32)
    o_ref[...] = (h + b_ref[3]).astype(o_ref.dtype)


def _choose_tile(B):
    if B <= 32:
        # One block covering the whole (tiny) batch, rounded to the 8-sublane granule.
        return max(8, _round_up(B, 8))
    # Large tile (amortizes ~0.35us/grid-step) but guarantee >= 2 grid steps so the
    # "parallel" batch axis can split across both TensorCores on v7x.
    return max(8, min(1024, _round_up(_cdiv(B, 2), 8)))


def rnn_regressor_forward(x, params, action_size):
    """x: [B, input_size] float32 -> [B, action_size] float32."""
    B, input_size = x.shape
    w_stack = params["w_stack"]   # [4, 128, 128] bf16, zero-padded
    b_stack = params["b_stack"]   # [4, 1, 128]  f32,  zero-padded

    TB = _choose_tile(B)
    # Only tiny batches (B < TB) get a cheap host-side row pad; otherwise Pallas masks
    # the ragged last tile itself (no extra HBM round trip over the batch).
    if B < TB:
        x_in = jnp.zeros((TB, input_size), x.dtype).at[:B].set(x)
    else:
        x_in = x
    B_in = x_in.shape[0]
    num_steps = _cdiv(B_in, TB)
    rows_exec = num_steps * TB

    # Advisory cost: padded FLOPs actually executed + actual bytes moved.
    flops = 2 * rows_exec * (input_size * PAD + 3 * PAD * PAD)
    bytes_accessed = (x_in.size * x_in.dtype.itemsize
                      + w_stack.size * w_stack.dtype.itemsize
                      + b_stack.size * b_stack.dtype.itemsize
                      + rows_exec * PAD * 4)
    cost = pl.CostEstimate(flops=flops, transcendentals=0,
                           bytes_accessed=bytes_accessed)

    out_p = pl.pallas_call(
        mlp_kernel,
        out_shape=jax.ShapeDtypeStruct((B_in, PAD), jnp.float32),
        grid=(num_steps,),
        in_specs=[
            pl.BlockSpec((TB, input_size), lambda i: (i, 0)),           # x tile (pipelined)
            pl.BlockSpec((N_LAYERS, PAD, PAD), lambda i: (0, 0, 0)),    # weights, VMEM-resident
            pl.BlockSpec((N_LAYERS, 1, PAD), lambda i: (0, 0, 0)),      # biases, VMEM-resident
        ],
        out_specs=pl.BlockSpec((TB, PAD), lambda i: (i, 0)),
        compiler_params=pltpu.CompilerParams(
            dimension_semantics=("parallel",)),
        cost_estimate=cost,
    )(x_in, w_stack, b_stack)

    # NOTE: this slice is an extra pass over the padded output; consumers that can use
    # the lane-dense [B, 128] slab should take `out_p` directly.
    return out_p[:B, :action_size]


def init_params(key, input_size, action_size):
    """nn.Linear-style init U(-1/sqrt(fan_in), +1/sqrt(fan_in)); weights stored [in, out]
    (transpose of PyTorch layout), packed into one zero-padded bf16 [4,128,128] stack;
    biases into an f32 [4,1,128] slab."""
    dims = [(input_size, HIDDEN), (HIDDEN, HIDDEN), (HIDDEN, HIDDEN), (HIDDEN, action_size)]
    w_stack = jnp.zeros((N_LAYERS, PAD, PAD), jnp.float32)
    b_stack = jnp.zeros((N_LAYERS, 1, PAD), jnp.float32)
    for layer, (fan_in, fan_out) in enumerate(dims):
        key, kw, kb = jax.random.split(key, 3)
        bound = 1.0 / (fan_in ** 0.5)
        w = jax.random.uniform(kw, (fan_in, fan_out), jnp.float32, minval=-bound, maxval=bound)
        b = jax.random.uniform(kb, (fan_out,), jnp.float32, minval=-bound, maxval=bound)
        w_stack = w_stack.at[layer, :fan_in, :fan_out].set(w)
        b_stack = b_stack.at[layer, 0, :fan_out].set(b)
    # bf16 weights: halves the weight DMA and enables the fast bf16 MXU path.
    return {"w_stack": w_stack.astype(jnp.bfloat16), "b_stack": b_stack}


def ref_forward(x, params, input_size, action_size):
    """Pure-JAX reference mirroring the kernel numerics (bf16 MXU inputs, f32 accumulate)."""
    w, b = params["w_stack"], params["b_stack"]

    def dot(a, wl):
        return jnp.dot(a.astype(jnp.bfloat16), wl, preferred_element_type=jnp.float32)

    h = jnp.maximum(dot(x, w[0, :input_size, :HIDDEN]) + b[0, 0, :HIDDEN], 0.0)
    h = jnp.maximum(dot(h, w[1, :HIDDEN, :HIDDEN]) + b[1, 0, :HIDDEN], 0.0)
    h = jnp.maximum(dot(h, w[2, :HIDDEN, :HIDDEN]) + b[2, 0, :HIDDEN], 0.0)
    return dot(h, w[3, :HIDDEN, :action_size]) + b[3, 0, :action_size]


if __name__ == "__main__":
    key = jax.random.PRNGKey(0)
    input_size = 16
    action_size = 4

    kp, kx1, kx2 = jax.random.split(key, 3)
    params = init_params(kp, input_size, action_size)

    # Tiny-batch case (single-block path, matches the module's typical usage).
    x_small = jax.random.normal(kx1, (2, input_size), jnp.float32)
    out_small = rnn_regressor_forward(x_small, params, action_size)
    jax.block_until_ready(out_small)
    exp_small = ref_forward(x_small, params, input_size, action_size)
    assert out_small.shape == (2, action_size)
    assert jnp.allclose(out_small, exp_small, atol=1e-3, rtol=1e-3)

    # Multi-step pipelined case (2 grid steps; weights stay VMEM-resident across steps).
    x_big = jax.random.normal(kx2, (48, input_size), jnp.float32)
    out_big = rnn_regressor_forward(x_big, params, action_size)
    jax.block_until_ready(out_big)
    exp_big = ref_forward(x_big, params, input_size, action_size)
    assert out_big.shape == (48, action_size)
    assert jnp.allclose(out_big, exp_big, atol=1e-3, rtol=1e-3)

    print("KERNEL_OK")
</pallas_src>

<mosaic_0001>
module attributes {stable_mosaic.version = 11 : i64} {
  func.func @mlp_kernel(%arg0: i32, %arg1: memref<8x16xf32, #tpu.memory_space<vmem>>, %arg2: memref<4x128x128xbf16, #tpu.memory_space<vmem>>, %arg3: memref<4x1x128xf32, #tpu.memory_space<vmem>>, %arg4: memref<8x128xf32, #tpu.memory_space<vmem>>) attributes {dimension_semantics = [#tpu.dimension_semantics<parallel>], iteration_bounds = array<i64: 1>, scalar_prefetch = 0 : i64, scratch_operands = 0 : i64, tpu.core_type = #tpu.core_type<tc>, window_params = [{transform_indices = @transform_0, window_bounds = array<i64: 8, 16>}, {pipeline_mode = #tpu.pipeline_mode<synchronous>, transform_indices = @transform_1, window_bounds = array<i64: 4, 128, 128>}, {pipeline_mode = #tpu.pipeline_mode<synchronous>, transform_indices = @transform_2, window_bounds = array<i64: 4, 1, 128>}, {transform_indices = @transform_3, window_bounds = array<i64: 8, 128>}]} {
    %c0 = arith.constant 0 : index
    %c0_0 = arith.constant 0 : index
    %0 = vector.load %arg1[%c0, %c0_0] : memref<8x16xf32, #tpu.memory_space<vmem>>, vector<8x16xf32>
    %1 = arith.truncf %0 : vector<8x16xf32> to vector<8x16xbf16>
    %c0_1 = arith.constant 0 : index
    %c0_2 = arith.constant 0 : index
    %c0_3 = arith.constant 0 : index
    %2 = vector.load %arg2[%c0_1, %c0_2, %c0_3] : memref<4x128x128xbf16, #tpu.memory_space<vmem>>, vector<1x128x128xbf16>
    %3 = vector.shape_cast %2 : vector<1x128x128xbf16> to vector<128x128xbf16>
    %4 = vector.extract_strided_slice %3 {offsets = [0, 0], sizes = [16, 128], strides = [1, 1]} : vector<128x128xbf16> to vector<16x128xbf16>
    %cst = arith.constant dense<0.000000e+00> : vector<8x128xf32>
    %5 = tpu.matmul %1, %4, %cst {dimension_numbers = #tpu.dot_dimension_numbers<[1], [0], [0], [1], [0, 0, 1, 1], [], []>} : vector<8x16xbf16>, vector<16x128xbf16>, vector<8x128xf32> -> vector<8x128xf32>
    %c0_4 = arith.constant 0 : index
    %c0_5 = arith.constant 0 : index
    %c0_6 = arith.constant 0 : index
    %6 = vector.load %arg3[%c0_4, %c0_5, %c0_6] : memref<4x1x128xf32, #tpu.memory_space<vmem>>, vector<1x1x128xf32>
    %7 = vector.shape_cast %6 : vector<1x1x128xf32> to vector<1x128xf32>
    %8 = vector.broadcast %7 : vector<1x128xf32> to vector<8x128xf32>
    %9 = arith.addf %5, %8 : vector<8x128xf32>
    %cst_7 = arith.constant 0.000000e+00 : f32
    %10 = vector.broadcast %cst_7 : f32 to vector<8x128xf32>
    %11 = arith.maximumf %9, %10 : vector<8x128xf32>
    %12 = arith.truncf %11 : vector<8x128xf32> to vector<8x128xbf16>
    %c1 = arith.constant 1 : index
    %c0_8 = arith.constant 0 : index
    %c0_9 = arith.constant 0 : index
    %13 = vector.load %arg2[%c1, %c0_8, %c0_9] : memref<4x128x128xbf16, #tpu.memory_space<vmem>>, vector<1x128x128xbf16>
    %14 = vector.shape_cast %13 : vector<1x128x128xbf16> to vector<128x128xbf16>
    %cst_10 = arith.constant dense<0.000000e+00> : vector<8x128xf32>
    %15 = tpu.matmul %12, %14, %cst_10 {dimension_numbers = #tpu.dot_dimension_numbers<[1], [0], [0], [1], [0, 0, 1, 1], [], []>} : vector<8x128xbf16>, vector<128x128xbf16>, vector<8x128xf32> -> vector<8x128xf32>
    %c1_11 = arith.constant 1 : index
    %c0_12 = arith.constant 0 : index
    %c0_13 = arith.constant 0 : index
    %16 = vector.load %arg3[%c1_11, %c0_12, %c0_13] : memref<4x1x128xf32, #tpu.memory_space<vmem>>, vector<1x1x128xf32>
    %17 = vector.shape_cast %16 : vector<1x1x128xf32> to vector<1x128xf32>
    %18 = vector.broadcast %17 : vector<1x128xf32> to vector<8x128xf32>
    %19 = arith.addf %15, %18 : vector<8x128xf32>
    %cst_14 = arith.constant 0.000000e+00 : f32
    %20 = vector.broadcast %cst_14 : f32 to vector<8x128xf32>
    %21 = arith.maximumf %19, %20 : vector<8x128xf32>
    %22 = arith.truncf %21 : vector<8x128xf32> to vector<8x128xbf16>
    %c2 = arith.constant 2 : index
    %c0_15 = arith.constant 0 : index
    %c0_16 = arith.constant 0 : index
    %23 = vector.load %arg2[%c2, %c0_15, %c0_16] : memref<4x128x128xbf16, #tpu.memory_space<vmem>>, vector<1x128x128xbf16>
    %24 = vector.shape_cast %23 : vector<1x128x128xbf16> to vector<128x128xbf16>
    %cst_17 = arith.constant dense<0.000000e+00> : vector<8x128xf32>
    %25 = tpu.matmul %22, %24, %cst_17 {dimension_numbers = #tpu.dot_dimension_numbers<[1], [0], [0], [1], [0, 0, 1, 1], [], []>} : vector<8x128xbf16>, vector<128x128xbf16>, vector<8x128xf32> -> vector<8x128xf32>
    %c2_18 = arith.constant 2 : index
    %c0_19 = arith.constant 0 : index
    %c0_20 = arith.constant 0 : index
    %26 = vector.load %arg3[%c2_18, %c0_19, %c0_20] : memref<4x1x128xf32, #tpu.memory_space<vmem>>, vector<1x1x128xf32>
    %27 = vector.shape_cast %26 : vector<1x1x128xf32> to vector<1x128xf32>
    %28 = vector.broadcast %27 : vector<1x128xf32> to vector<8x128xf32>
    %29 = arith.addf %25, %28 : vector<8x128xf32>
    %cst_21 = arith.constant 0.000000e+00 : f32
    %30 = vector.broadcast %cst_21 : f32 to vector<8x128xf32>
    %31 = arith.maximumf %29, %30 : vector<8x128xf32>
    %32 = arith.truncf %31 : vector<8x128xf32> to vector<8x128xbf16>
    %c3 = arith.constant 3 : index
    %c0_22 = arith.constant 0 : index
    %c0_23 = arith.constant 0 : index
    %33 = vector.load %arg2[%c3, %c0_22, %c0_23] : memref<4x128x128xbf16, #tpu.memory_space<vmem>>, vector<1x128x128xbf16>
    %34 = vector.shape_cast %33 : vector<1x128x128xbf16> to vector<128x128xbf16>
    %cst_24 = arith.constant dense<0.000000e+00> : vector<8x128xf32>
    %35 = tpu.matmul %32, %34, %cst_24 {dimension_numbers = #tpu.dot_dimension_numbers<[1], [0], [0], [1], [0, 0, 1, 1], [], []>} : vector<8x128xbf16>, vector<128x128xbf16>, vector<8x128xf32> -> vector<8x128xf32>
    %c3_25 = arith.constant 3 : index
    %c0_26 = arith.constant 0 : index
    %c0_27 = arith.constant 0 : index
    %36 = vector.load %arg3[%c3_25, %c0_26, %c0_27] : memref<4x1x128xf32, #tpu.memory_space<vmem>>, vector<1x1x128xf32>
    %37 = vector.shape_cast %36 : vector<1x1x128xf32> to vector<1x128xf32>
    %38 = vector.broadcast %37 : vector<1x128xf32> to vector<8x128xf32>
    %39 = arith.addf %35, %38 : vector<8x128xf32>
    %c0_28 = arith.constant 0 : index
    %c0_29 = arith.constant 0 : index
    %40 = vector.load %arg4[%c0_28, %c0_29] : memref<8x128xf32, #tpu.memory_space<vmem>>, vector<8x128xf32>
    tpu.vector_store %arg4[%c0_28, %c0_29], %39 {strides = array<i32>} : memref<8x128xf32, #tpu.memory_space<vmem>>, vector<8x128xf32>,
    return
  }
  func.func @transform_0(%arg0: i32) -> (i32, i32) {
    %c0_i32 = arith.constant 0 : i32
    %c0_i32_0 = arith.constant 0 : i32
    return %arg0, %c0_i32 : i32, i32
  }
  func.func @transform_1(%arg0: i32) -> (i32, i32, i32) {
    %c0_i32 = arith.constant 0 : i32
    %c0_i32_0 = arith.constant 0 : i32
    %c0_i32_1 = arith.constant 0 : i32
    %c0_i32_2 = arith.constant 0 : i32
    return %c0_i32, %c0_i32_0, %c0_i32_1 : i32, i32, i32
  }
  func.func @transform_2(%arg0: i32) -> (i32, i32, i32) {
    %c0_i32 = arith.constant 0 : i32
    %c0_i32_0 = arith.constant 0 : i32
    %c0_i32_1 = arith.constant 0 : i32
    %c0_i32_2 = arith.constant 0 : i32
    return %c0_i32, %c0_i32_0, %c0_i32_1 : i32, i32, i32
  }
  func.func @transform_3(%arg0: i32) -> (i32, i32) {
    %c0_i32 = arith.constant 0 : i32
    %c0_i32_0 = arith.constant 0 : i32
    return %arg0, %c0_i32 : i32, i32
  }
}

</mosaic_0001>

<llo_original>
// kernel: tpu_custom_call.1
$region0: #{tpu_custom_call.1}
  #allocation0 [shape = 'u32[]', space=smem, size = 0x4, offset = 0x4, fixed_abs, tag = 'smem constant byte address 0x4 - core index']
  #allocation1 [shape = 'u32[72,128]{1,0:T(1,128)}', space=vmem, size = 0x9000, scoped, tag = 'internal scratch']
  %s0 = inlined_call_operand.hbm [shape: f32[8,16], index: 0, kind: input, shape index: {}]
  %s1 = inlined_call_operand.hbm [shape: bf16[4,128,128], index: 1, kind: input, shape index: {}]
  %s2 = inlined_call_operand.hbm [shape: f32[4,1,128], index: 2, kind: input, shape index: {}]
  %s3 = inlined_call_operand.hbm [shape: f32[8,128], index: 3, kind: output, shape index: {}]
  %s4 = sld [smem:[#allocation0]]
  $region34: #{tpu_custom_call.1} parent=0
    _
  %s6 = ssub.s32 1, %s4
  %s7 = scalar_select 0, %s6, %s4
  $region1: #{tpu_custom_call.1} parent=0
    #allocation2 [shape = 'u8[4096]{0}', space=vmem, size = 0x1000, scoped, tag = 'input window, operand 0, single buffered']
    #allocation3 [shape = 's32[1]{0}', space=sflag, size = 0x4, scoped, tag = 'scoped memory for tpu_custom_call.1']
    #allocation4 [shape = 's32[1]{0}', space=sflag, size = 0x4, scoped, tag = 'scoped memory for tpu_custom_call.1']
    #allocation5 [shape = 'u8[131072]{0}', space=vmem, size = 0x20000, scoped, tag = 'input window, operand 1, single buffered']
    #allocation6 [shape = 's32[1]{0}', space=sflag, size = 0x4, scoped, tag = 'scoped memory for tpu_custom_call.1']
    #allocation7 [shape = 'u8[2048]{0}', space=vmem, size = 0x800, scoped, tag = 'input window, operand 2, single buffered']
    #allocation8 [shape = 'u8[4096]{0}', space=vmem, size = 0x1000, scoped, tag = 'output window, operand 0, single buffered']
    %8 = vsyncpa [#allocation3], 0
    %9 = vsyncpa [#allocation6], 0
    %10 = vsyncpa [#allocation4], 0
    // Predicated region
    $region2: #{tpu_custom_call.1} parent=1 // pred_check
      _
    $region3: #{tpu_custom_call.1} parent=1 // pred_check_branch
      %12 = sbr.rel (0) target = $region5
    $region4: #{tpu_custom_call.1} parent=1 // pred_region
      %14 = vsyncadd [#allocation3], 0
      %s16 = sshll.u32 %s0, 4
      %s17 = int_to_ptr.hbm [resolvable:$true] %s16
      %s18 = sshll.u32 [#allocation2], 4
      %s19 = int_to_ptr.vmem [resolvable:$true] %s18
      %21 = dma.hbm_to_vmem [thread:$0]  %s17, 128, %s19, [#allocation3]
    $region5: #{tpu_custom_call.1} parent=1 // pred_fallthru
      _
    // Predicated region
    $region6: #{tpu_custom_call.1} parent=1 // pred_check
      _
    $region7: #{tpu_custom_call.1} parent=1 // pred_check_branch
      %23 = sbr.rel (0) target = $region9
    $region8: #{tpu_custom_call.1} parent=1 // pred_region
      %25 = vsyncadd [#allocation6], 0
      %s26 = sshll.u32 %s1, 4
      %s27 = int_to_ptr.hbm [resolvable:$true] %s26
      %s28 = sshll.u32 [#allocation5], 4
      %s29 = int_to_ptr.vmem [resolvable:$true] %s28
      %34 = dma.hbm_to_vmem [thread:$0]  %s27, 4096, %s29, [#allocation6], 64, 64, 4
    $region9: #{tpu_custom_call.1} parent=1 // pred_fallthru
      _
    // Predicated region
    $region10: #{tpu_custom_call.1} parent=1 // pred_check
      _
    $region11: #{tpu_custom_call.1} parent=1 // pred_check_branch
      %36 = sbr.rel (0) target = $region13
    $region12: #{tpu_custom_call.1} parent=1 // pred_region
      %38 = vsyncadd [#allocation6], 0
      %s39 = sshll.u32 %s2, 4
      %s40 = int_to_ptr.hbm [resolvable:$true] %s39
      %s41 = sshll.u32 [#allocation7], 4
      %s42 = int_to_ptr.vmem [resolvable:$true] %s41
      %47 = dma.hbm_to_vmem [thread:$0]  %s40, 64, %s42, [#allocation6], 16, 16, 1
    $region13: #{tpu_custom_call.1} parent=1 // pred_fallthru
      _
    // Predicated region
    $region14: #{tpu_custom_call.1} parent=1 // pred_check
      _
    $region15: #{tpu_custom_call.1} parent=1 // pred_check_branch
      %49 = sbr.rel (0) target = $region17
    $region16: #{tpu_custom_call.1} parent=1 // pred_region
      %51 = dma.done [#allocation3], 128
    $region17: #{tpu_custom_call.1} parent=1 // pred_fallthru
      _
    // Predicated region
    $region18: #{tpu_custom_call.1} parent=1 // pred_check
      _
    $region19: #{tpu_custom_call.1} parent=1 // pred_check_branch
      %53 = sbr.rel (0) target = $region21
    $region20: #{tpu_custom_call.1} parent=1 // pred_region
      %55 = dma.done [#allocation6], 4096
    $region21: #{tpu_custom_call.1} parent=1 // pred_fallthru
      _
    // Predicated region
    $region22: #{tpu_custom_call.1} parent=1 // pred_check
      _
    $region23: #{tpu_custom_call.1} parent=1 // pred_check_branch
      %57 = sbr.rel (0) target = $region25
    $region24: #{tpu_custom_call.1} parent=1 // pred_region
      %59 = dma.done [#allocation6], 64
    $region25: #{tpu_custom_call.1} parent=1 // pred_fallthru
      _
    %v61 = vld [vmem:[#allocation2] sm:$0xff]
    %v62 = vpack.c.bf16 %v61, %v61
    %v63 = vld [vmem:[#allocation5] sm:$0xf]
    %v64 = vld [vmem:[#allocation5 + $0x4] sm:$0xf]
    %v65 = vld [vmem:[#allocation7] sm:$0x1]
    %v67 = vperm.slane %v65, 0
    %v71 = vunpack.c.l.b16 %v63
    %v72 = vunpack.c.l.b16 %v64
    %v73 = vpack.c.b16 %v72, %v71
    %vm75 = vcmask 130048
    %v77 = vsel %vm75, %v62, 0
    %79 = vmatpush.bf16.msra.mxu0 0
    %80 = vmatpush.bf16.msra.mxu0 0
    %81 = vmatpush.bf16.msra.mxu0 0
    %82 = vmatpush.bf16.msra.mxu0 0
    %83 = vmatpush.bf16.msra.mxu0 0
    %84 = vmatpush.bf16.msra.mxu0 0
    %85 = vmatpush.bf16.msra.mxu0 0
    %86 = vmatpush.bf16.msra.mxu0 %v73
    %87 = vmatmul.bf16.gmra.mxu0 %v77
    %v88 = vpop.f32.mrf.mxu0
    %v89 = vadd.f32 %v67, %v88
    %v90 = vpop.f32.mrf.mxu0
    %91 = vdwg.mxu0
    %v92 = vmax.f32 %v89, 0.0
    %v93 = vpack.c.bf16 %v92, %v92
    %s94 = scalar_lea.vmem [#allocation5], 64
    %v95 = vld [vmem:[%s94] sm:$0xf]
    %v96 = vld [vmem:[%s94 + $0x4] sm:$0xf]
    %v97 = vld [vmem:[%s94 + $0x8] sm:$0xf]
    %v98 = vld [vmem:[%s94 + $0xc] sm:$0xf]
    %v99 = vld [vmem:[%s94 + $0x10] sm:$0xf]
    %v100 = vld [vmem:[%s94 + $0x14] sm:$0xf]
    %v101 = vld [vmem:[%s94 + $0x18] sm:$0xf]
    %v102 = vld [vmem:[%s94 + $0x1c] sm:$0xf]
    %v103 = vld [vmem:[%s94 + $0x20] sm:$0xf]
    %v104 = vld [vmem:[%s94 + $0x24] sm:$0xf]
    %v105 = vld [vmem:[%s94 + $0x28] sm:$0xf]
    %v106 = vld [vmem:[%s94 + $0x2c] sm:$0xf]
    %v107 = vld [vmem:[%s94 + $0x30] sm:$0xf]
    %v108 = vld [vmem:[%s94 + $0x34] sm:$0xf]
    %v109 = vld [vmem:[%s94 + $0x38] sm:$0xf]
    %v110 = vld [vmem:[%s94 + $0x3c] sm:$0xf]
    %s111 = scalar_lea.vmem [#allocation7], 1
    %v112 = vld [vmem:[%s111] sm:$0x1]
    %v114 = vperm.slane %v112, 0
    %v132 = vunpack.c.l.b16 %v95
    %v133 = vunpack.c.l.b16 %v96
    %v134 = vunpack.c.l.b16 %v97
    %v135 = vunpack.c.l.b16 %v98
    %v136 = vunpack.c.l.b16 %v99
    %v137 = vunpack.c.l.b16 %v100
    %v138 = vunpack.c.l.b16 %v101
    %v139 = vunpack.c.l.b16 %v102
    %v140 = vunpack.c.l.b16 %v103
    %v141 = vunpack.c.l.b16 %v104
    %v142 = vunpack.c.l.b16 %v105
    %v143 = vunpack.c.l.b16 %v106
    %v144 = vunpack.c.l.b16 %v107
    %v145 = vunpack.c.l.b16 %v108
    %v146 = vunpack.c.l.b16 %v109
    %v147 = vunpack.c.l.b16 %v110
    %v148 = vpack.c.b16 %v133, %v132
    %v149 = vpack.c.b16 %v135, %v134
    %v150 = vpack.c.b16 %v137, %v136
    %v151 = vpack.c.b16 %v139, %v138
    %v152 = vpack.c.b16 %v141, %v140
    %v153 = vpack.c.b16 %v143, %v142
    %v154 = vpack.c.b16 %v145, %v144
    %v155 = vpack.c.b16 %v147, %v146
    %164 = vmatpush.bf16.msra.mxu0 %v155
    %165 = vmatpush.bf16.msra.mxu0 %v154
    %166 = vmatpush.bf16.msra.mxu0 %v153
    %167 = vmatpush.bf16.msra.mxu0 %v152
    %168 = vmatpush.bf16.msra.mxu0 %v151
    %169 = vmatpush.bf16.msra.mxu0 %v150
    %170 = vmatpush.bf16.msra.mxu0 %v149
    %171 = vmatpush.bf16.msra.mxu0 %v148
    %172 = vmatmul.bf16.gmra.mxu0 %v93
    %v173 = vpop.f32.mrf.mxu0
    %v174 = vadd.f32 %v114, %v173
    %v175 = vpop.f32.mrf.mxu0
    %176 = vdwg.mxu0
    %v177 = vmax.f32 %v174, 0.0
    %v178 = vpack.c.bf16 %v177, %v177
    %s179 = scalar_lea.vmem [#allocation5], 128
    %v180 = vld [vmem:[%s179] sm:$0xf]
    %v181 = vld [vmem:[%s179 + $0x4] sm:$0xf]
    %v182 = vld [vmem:[%s179 + $0x8] sm:$0xf]
    %v183 = vld [vmem:[%s179 + $0xc] sm:$0xf]
    %v184 = vld [vmem:[%s179 + $0x10] sm:$0xf]
    %v185 = vld [vmem:[%s179 + $0x14] sm:$0xf]
    %v186 = vld [vmem:[%s179 + $0x18] sm:$0xf]
    %v187 = vld [vmem:[%s179 + $0x1c] sm:$0xf]
    %v188 = vld [vmem:[%s179 + $0x20] sm:$0xf]
    %v189 = vld [vmem:[%s179 + $0x24] sm:$0xf]
    %v190 = vld [vmem:[%s179 + $0x28] sm:$0xf]
    %v191 = vld [vmem:[%s179 + $0x2c] sm:$0xf]
    %v192 = vld [vmem:[%s179 + $0x30] sm:$0xf]
    %v193 = vld [vmem:[%s179 + $0x34] sm:$0xf]
    %v194 = vld [vmem:[%s179 + $0x38] sm:$0xf]
    %v195 = vld [vmem:[%s179 + $0x3c] sm:$0xf]
    %s196 = scalar_lea.vmem [#allocation7], 2
    %v197 = vld [vmem:[%s196] sm:$0x1]
    %v199 = vperm.slane %v197, 0
    %v217 = vunpack.c.l.b16 %v180
    %v218 = vunpack.c.l.b16 %v181
    %v219 = vunpack.c.l.b16 %v182
    %v220 = vunpack.c.l.b16 %v183
    %v221 = vunpack.c.l.b16 %v184
    %v222 = vunpack.c.l.b16 %v185
    %v223 = vunpack.c.l.b16 %v186
    %v224 = vunpack.c.l.b16 %v187
    %v225 = vunpack.c.l.b16 %v188
    %v226 = vunpack.c.l.b16 %v189
    %v227 = vunpack.c.l.b16 %v190
    %v228 = vunpack.c.l.b16 %v191
    %v229 = vunpack.c.l.b16 %v192
    %v230 = vunpack.c.l.b16 %v193
    %v231 = vunpack.c.l.b16 %v194
    %v232 = vunpack.c.l.b16 %v195
    %v233 = vpack.c.b16 %v218, %v217
    %v234 = vpack.c.b16 %v220, %v219
    %v235 = vpack.c.b16 %v222, %v221
    %v236 = vpack.c.b16 %v224, %v223
    %v237 = vpack.c.b16 %v226, %v225
    %v238 = vpack.c.b16 %v228, %v227
    %v239 = vpack.c.b16 %v230, %v229
    %v240 = vpack.c.b16 %v232, %v231
    %249 = vmatpush.bf16.msra.mxu0 %v240
    %250 = vmatpush.bf16.msra.mxu0 %v239
    %251 = vmatpush.bf16.msra.mxu0 %v238
    %252 = vmatpush.bf16.msra.mxu0 %v237
    %253 = vmatpush.bf16.msra.mxu0 %v236
    %254 = vmatpush.bf16.msra.mxu0 %v235
    %255 = vmatpush.bf16.msra.mxu0 %v234
    %256 = vmatpush.bf16.msra.mxu0 %v233
    %257 = vmatmul.bf16.gmra.mxu0 %v178
    %v258 = vpop.f32.mrf.mxu0
    %v259 = vadd.f32 %v199, %v258
    %v260 = vpop.f32.mrf.mxu0
    %261 = vdwg.mxu0
    %v262 = vmax.f32 %v259, 0.0
    %v263 = vpack.c.bf16 %v262, %v262
    %s264 = scalar_lea.vmem [#allocation5], 192
    %v265 = vld [vmem:[%s264] sm:$0xf]
    %v266 = vld [vmem:[%s264 + $0x4] sm:$0xf]
    %v267 = vld [vmem:[%s264 + $0x8] sm:$0xf]
    %v268 = vld [vmem:[%s264 + $0xc] sm:$0xf]
    %v269 = vld [vmem:[%s264 + $0x10] sm:$0xf]
    %v270 = vld [vmem:[%s264 + $0x14] sm:$0xf]
    %v271 = vld [vmem:[%s264 + $0x18] sm:$0xf]
    %v272 = vld [vmem:[%s264 + $0x1c] sm:$0xf]
    %v273 = vld [vmem:[%s264 + $0x20] sm:$0xf]
    %v274 = vld [vmem:[%s264 + $0x24] sm:$0xf]
    %v275 = vld [vmem:[%s264 + $0x28] sm:$0xf]
    %v276 = vld [vmem:[%s264 + $0x2c] sm:$0xf]
    %v277 = vld [vmem:[%s264 + $0x30] sm:$0xf]
    %v278 = vld [vmem:[%s264 + $0x34] sm:$0xf]
    %v279 = vld [vmem:[%s264 + $0x38] sm:$0xf]
    %v280 = vld [vmem:[%s264 + $0x3c] sm:$0xf]
    %s281 = scalar_lea.vmem [#allocation7], 3
    %v282 = vld [vmem:[%s281] sm:$0x1]
    %v284 = vperm.slane %v282, 0
    %v302 = vunpack.c.l.b16 %v265
    %v303 = vunpack.c.l.b16 %v266
    %v304 = vunpack.c.l.b16 %v267
    %v305 = vunpack.c.l.b16 %v268
    %v306 = vunpack.c.l.b16 %v269
    %v307 = vunpack.c.l.b16 %v270
    %v308 = vunpack.c.l.b16 %v271
    %v309 = vunpack.c.l.b16 %v272
    %v310 = vunpack.c.l.b16 %v273
    %v311 = vunpack.c.l.b16 %v274
    %v312 = vunpack.c.l.b16 %v275
    %v313 = vunpack.c.l.b16 %v276
    %v314 = vunpack.c.l.b16 %v277
    %v315 = vunpack.c.l.b16 %v278
    %v316 = vunpack.c.l.b16 %v279
    %v317 = vunpack.c.l.b16 %v280
    %v318 = vpack.c.b16 %v303, %v302
    %v319 = vpack.c.b16 %v305, %v304
    %v320 = vpack.c.b16 %v307, %v306
    %v321 = vpack.c.b16 %v309, %v308
    %v322 = vpack.c.b16 %v311, %v310
    %v323 = vpack.c.b16 %v313, %v312
    %v324 = vpack.c.b16 %v315, %v314
    %v325 = vpack.c.b16 %v317, %v316
    %334 = vmatpush.bf16.msra.mxu0 %v325
    %335 = vmatpush.bf16.msra.mxu0 %v324
    %336 = vmatpush.bf16.msra.mxu0 %v323
    %337 = vmatpush.bf16.msra.mxu0 %v322
    %338 = vmatpush.bf16.msra.mxu0 %v321
    %339 = vmatpush.bf16.msra.mxu0 %v320
    %340 = vmatpush.bf16.msra.mxu0 %v319
    %341 = vmatpush.bf16.msra.mxu0 %v318
    %342 = vmatmul.bf16.gmra.mxu0 %v263
    %v343 = vpop.f32.mrf.mxu0
    %v344 = vadd.f32 %v284, %v343
    %v345 = vpop.f32.mrf.mxu0
    %346 = vdwg.mxu0
    %347 = vst [vmem:[#allocation8] sm:$0xff] %v344
    // Predicated region
    $region26: #{tpu_custom_call.1} parent=1 // pred_check
      _
    $region27: #{tpu_custom_call.1} parent=1 // pred_check_branch
      %349 = sbr.rel (0) target = $region29
    $region28: #{tpu_custom_call.1} parent=1 // pred_region
      %351 = vsyncadd [#allocation4], 0
      %s353 = sshll.u32 [#allocation8], 4
      %s354 = int_to_ptr.vmem [resolvable:$true] %s353
      %s355 = sshll.u32 %s3, 4
      %s356 = int_to_ptr.hbm [resolvable:$true] %s355
      %358 = dma.vmem_to_hbm [thread:$0]  %s354, 128, %s356, [#allocation4]
    $region29: #{tpu_custom_call.1} parent=1 // pred_fallthru
      _
    // Predicated region
    $region30: #{tpu_custom_call.1} parent=1 // pred_check
      _
    $region31: #{tpu_custom_call.1} parent=1 // pred_check_branch
      %360 = sbr.rel (0) target = $region33
    $region32: #{tpu_custom_call.1} parent=1 // pred_region
      %362 = dma.done [#allocation4], 128
    $region33: #{tpu_custom_call.1} parent=1 // pred_fallthru
      _
    %363 = vsyncpa [#allocation3], 1
    %364 = vsyncpa [#allocation6], 1
    %365 = vsyncpa [#allocation4], 1

</llo_original>
